<compile_context>
chip_gen: v7x
topology: tpu7x:2x2x1
jax: 0.10.0
libtpu: 0.0.40
codegen_flags: <defaults>
</compile_context>

<pallas_src>
import functools
import string

import jax
import jax.numpy as jnp
import numpy as np
from jax.experimental import pallas as pl
from jax.experimental.pallas import tpu as pltpu

VOCAB = string.ascii_lowercase + string.digits     # 36 symbols, same as module
_VOCAB_BYTES = np.frombuffer(VOCAB.encode("ascii"), dtype=np.uint8)
BLANK = 0


def _round_up(n, m):
    return ((n + m - 1) // m) * m


def _argmax_time_kernel(x_ref, idx_ref, *, sentinel):
    """x_ref: (Cp, tT) class-major emissions tile.  idx_ref: (1, tT) int32."""
    x = x_ref[...]                                              # (Cp, tT)
    col_max = jnp.max(x, axis=0, keepdims=True)                 # (1, tT)  sublane reduce
    class_ids = jax.lax.broadcasted_iota(jnp.int32, x.shape, 0)  # (Cp, tT)
    # First-occurrence tie-break: smallest class index attaining the max
    # (matches torch.argmax / np.argmax).
    idx = jnp.min(
        jnp.where(x == col_max, class_ids, jnp.int32(sentinel)),
        axis=0,
        keepdims=True,
    ).astype(jnp.int32)                                          # (1, tT)
    idx_ref[...] = idx


def ctc_greedy_argmax(x, *, tile_t=None, compute_dtype=None):
    """x: (T, C) float emissions.  Returns int32 argmax indices, shape (T,)."""
    T, C = x.shape
    if compute_dtype is not None:
        x = x.astype(compute_dtype)   # e.g. jnp.bfloat16 to halve HBM traffic

    c_pad = _round_up(C, 8)                       # sublane multiple
    itemsize = x.dtype.itemsize
    if tile_t is None:
        # Keep a double-buffered input tile well under v7x's smaller (64 MiB
        # physical / 32 MiB default-scoped) VMEM even for large vocabularies.
        budget = 4 * 1024 * 1024                  # bytes per input tile buffer
        tile_t = min(2048, max(128, (budget // (c_pad * itemsize)) // 128 * 128))
    tile_t = max(128, _round_up(tile_t, 128))
    tile_t = min(tile_t, _round_up(T, 128))       # don't over-pad tiny sequences
    t_pad = _round_up(T, tile_t)

    if jnp.issubdtype(x.dtype, jnp.floating):
        pad_val = -jnp.inf                        # padded classes never win argmax
    else:
        pad_val = jnp.iinfo(x.dtype).min

    # Class-major layout: time on the 128-lane axis, classes on sublanes.
    xt = jnp.pad(x.T, ((0, c_pad - C), (0, t_pad - T)), constant_values=pad_val)

    n_tiles = t_pad // tile_t
    idx_pad = pl.pallas_call(
        functools.partial(_argmax_time_kernel, sentinel=c_pad),
        out_shape=jax.ShapeDtypeStruct((1, t_pad), jnp.int32),
        grid=(n_tiles,),
        in_specs=[pl.BlockSpec((c_pad, tile_t), lambda t: (0, t))],
        out_specs=pl.BlockSpec((1, tile_t), lambda t: (0, t)),
        compiler_params=pltpu.CompilerParams(
            dimension_semantics=("parallel",),
            vmem_limit_bytes=32 * 1024 * 1024,
        ),
    )(xt)
    return idx_pad[0, :T]


def greedy_ctc_decode(x, *, blank=BLANK, tile_t=None, compute_dtype=None):
    """Full forward-pass semantics of GreedyCTCDecoder (returns list[str])."""
    idx = ctc_greedy_argmax(x, tile_t=tile_t, compute_dtype=compute_dtype)
    # unique_consecutive ("keep first of each run") + blank filter: O(T)
    # elementwise pass on the kernel output, still on device.
    prev = jnp.concatenate([jnp.full((1,), -1, jnp.int32), idx[:-1]])
    keep = jnp.logical_and(idx != prev, idx != jnp.int32(blank))

    idx_np, keep_np = jax.block_until_ready((idx, keep))
    idx_np = np.asarray(idx_np)
    keep_np = np.asarray(keep_np).astype(bool)

    # Host glue: variable-length gather + char mapping + join/split
    # (no array semantics) — fully vectorized, no per-element Python loop.
    kept = idx_np[keep_np]
    joined = _VOCAB_BYTES[kept].tobytes().decode("ascii")
    return joined.replace("|", " ").strip().split()


def _reference_decode(x_np, *, blank=BLANK):
    """Pure-numpy replica of the PyTorch forward, for verification."""
    indices = np.argmax(x_np, axis=-1)
    uniq = [int(indices[0])] + [
        int(indices[t]) for t in range(1, indices.shape[0]) if indices[t] != indices[t - 1]
    ]
    uniq = [i for i in uniq if i != blank]
    joined = "".join(VOCAB[i] for i in uniq)
    return joined.replace("|", " ").strip().split()


if __name__ == "__main__":
    C = len(VOCAB)
    k1, k2 = jax.random.split(jax.random.PRNGKey(0))

    # Small, module-consistent case: T=8 time steps, 36-class vocab.
    x_small = jax.random.normal(k1, (8, C), dtype=jnp.float32)
    got = greedy_ctc_decode(x_small)
    want = _reference_decode(np.asarray(x_small))
    assert got == want, (got, want)

    # Multi-tile case: exercises the gridded / pipelined path (3 time tiles).
    x_long = jax.random.normal(k2, (300, C), dtype=jnp.float32)
    got_long = greedy_ctc_decode(x_long, tile_t=128)
    want_long = _reference_decode(np.asarray(x_long))
    assert got_long == want_long, (got_long, want_long)

    print("KERNEL_OK")
</pallas_src>

<mosaic_0001>
module attributes {stable_mosaic.version = 11 : i64} {
  func.func @_argmax_time_kernel(%arg0: i32, %arg1: memref<40x128xf32, #tpu.memory_space<vmem>>, %arg2: memref<1x128xi32, #tpu.memory_space<vmem>>) attributes {dimension_semantics = [#tpu.dimension_semantics<parallel>], iteration_bounds = array<i64: 1>, scalar_prefetch = 0 : i64, scratch_operands = 0 : i64, tpu.core_type = #tpu.core_type<tc>, window_params = [{transform_indices = @transform_0, window_bounds = array<i64: 40, 128>}, {transform_indices = @transform_1, window_bounds = array<i64: 1, 128>}]} {
    %c0 = arith.constant 0 : index
    %c0_0 = arith.constant 0 : index
    %0 = vector.load %arg1[%c0, %c0_0] : memref<40x128xf32, #tpu.memory_space<vmem>>, vector<40x128xf32>
    %cst = arith.constant dense<0xFF800000> : vector<128xf32>
    %1 = vector.multi_reduction <maximumf>, %0, %cst [0] : vector<40x128xf32> to vector<128xf32>
    %2 = vector.shape_cast %1 : vector<128xf32> to vector<1x128xf32>
    %3 = tpu.iota {dimensions = array<i32: 0>} : vector<40x128xi32>
    %4 = vector.broadcast %2 : vector<1x128xf32> to vector<40x128xf32>
    %5 = arith.cmpf oeq, %0, %4 : vector<40x128xf32>
    %c40_i32 = arith.constant 40 : i32
    %6 = vector.broadcast %c40_i32 : i32 to vector<40x128xi32>
    %7 = arith.select %5, %3, %6 : vector<40x128xi1>, vector<40x128xi32>
    %cst_1 = arith.constant dense<2147483647> : vector<128xi32>
    %8 = vector.multi_reduction <minsi>, %7, %cst_1 [0] : vector<40x128xi32> to vector<128xi32>
    %9 = vector.shape_cast %8 : vector<128xi32> to vector<1x128xi32>
    %c0_2 = arith.constant 0 : index
    %c0_3 = arith.constant 0 : index
    %10 = vector.load %arg2[%c0_2, %c0_3] : memref<1x128xi32, #tpu.memory_space<vmem>>, vector<1x128xi32>
    tpu.vector_store %arg2[%c0_2, %c0_3], %9 {strides = array<i32>} : memref<1x128xi32, #tpu.memory_space<vmem>>, vector<1x128xi32>,
    return
  }
  func.func @transform_0(%arg0: i32) -> (i32, i32) {
    %c0_i32 = arith.constant 0 : i32
    %c0_i32_0 = arith.constant 0 : i32
    return %c0_i32, %arg0 : i32, i32
  }
  func.func @transform_1(%arg0: i32) -> (i32, i32) {
    %c0_i32 = arith.constant 0 : i32
    %c0_i32_0 = arith.constant 0 : i32
    return %c0_i32, %arg0 : i32, i32
  }
}

</mosaic_0001>

<llo_original>
// kernel: tpu_custom_call.1
$region0: #{tpu_custom_call.1}
  #allocation0 [shape = 'u32[]', space=smem, size = 0x4, offset = 0x4, fixed_abs, tag = 'smem constant byte address 0x4 - core index']
  #allocation1 [shape = 'u32[144,128]{1,0:T(1,128)}', space=vmem, size = 0x12000, scoped, tag = 'internal scratch']
  %s0 = inlined_call_operand.hbm [shape: f32[40,128], index: 0, kind: input, shape index: {}]
  %s1 = inlined_call_operand.hbm [shape: s32[1,128], index: 1, kind: output, shape index: {}]
  %s2 = sld [smem:[#allocation0]]
  $region18: #{tpu_custom_call.1} parent=0
    _
  %s4 = ssub.s32 1, %s2
  %s5 = scalar_select 0, %s4, %s2
  $region1: #{tpu_custom_call.1} parent=0
    #allocation2 [shape = 'u8[20480]{0}', space=vmem, size = 0x5000, scoped, tag = 'input window, operand 0, single buffered']
    #allocation3 [shape = 's32[1]{0}', space=sflag, size = 0x4, scoped, tag = 'scoped memory for tpu_custom_call.1']
    #allocation4 [shape = 's32[1]{0}', space=sflag, size = 0x4, scoped, tag = 'scoped memory for tpu_custom_call.1']
    #allocation5 [shape = 'u8[512]{0}', space=vmem, size = 0x400, scoped, tag = 'output window, operand 0, single buffered']
    %6 = vsyncpa [#allocation3], 0
    %7 = vsyncpa [#allocation4], 0
    // Predicated region
    $region2: #{tpu_custom_call.1} parent=1 // pred_check
      _
    $region3: #{tpu_custom_call.1} parent=1 // pred_check_branch
      %9 = sbr.rel (0) target = $region5
    $region4: #{tpu_custom_call.1} parent=1 // pred_region
      %s11 = ssub.s32 640, 640
      %12 = vsyncadd [#allocation3], %s11
      %s13 = sshll.u32 [#allocation2], 4
      %s14 = int_to_ptr.vmem [resolvable:$true] %s13
      %19 = dma.hbm_to_vmem [thread:$0]  %s0, 640, %s14, [#allocation3], 128, 128, 8
    $region5: #{tpu_custom_call.1} parent=1 // pred_fallthru
      _
    // Predicated region
    $region6: #{tpu_custom_call.1} parent=1 // pred_check
      _
    $region7: #{tpu_custom_call.1} parent=1 // pred_check_branch
      %21 = sbr.rel (0) target = $region9
    $region8: #{tpu_custom_call.1} parent=1 // pred_region
      %22 = dma.done [#allocation3], 640
    $region9: #{tpu_custom_call.1} parent=1 // pred_fallthru
      _
    %v23 = vld [vmem:[#allocation2] sm:$0xff]
    %v24 = vld [vmem:[#allocation2 + $0x8] sm:$0xff]
    %v25 = vld [vmem:[#allocation2 + $0x10] sm:$0xff]
    %v26 = vld [vmem:[#allocation2 + $0x18] sm:$0xff]
    %v27 = vld [vmem:[#allocation2 + $0x20] sm:$0xff]
    %v28 = vmax.f32 %v23, %v27
    %v29 = vmax.f32 %v28, %v24
    %v30 = vmax.f32 %v25, %v26
    %v31 = vmax.f32 %v29, %v30
    %v32 = vrot.slane %v31, 4
    %v33 = vmax.f32 %v31, %v32
    %v34 = vrot.slane %v33, 2
    %v35 = vmax.f32 %v33, %v34
    %v36 = vrot.slane %v35, 1
    %v37 = vmax.f32 %v35, %v36
    %v38 = vlaneseq
    %v39 = vshrl.u32 %v38, 7
    %v40 = vadd.s32 %v39, 8
    %v41 = vadd.s32 %v39, 16
    %v42 = vadd.s32 %v39, 24
    %v43 = vadd.s32 %v39, 32
    %vm44 = vcmp.eq.f32.partialorder %v23, %v37
    %vm45 = vcmp.eq.f32.partialorder %v24, %v37
    %vm46 = vcmp.eq.f32.partialorder %v25, %v37
    %vm47 = vcmp.eq.f32.partialorder %v26, %v37
    %vm48 = vcmp.eq.f32.partialorder %v27, %v37
    %v49 = vsel %vm44, %v39, 40
    %v50 = vsel %vm45, %v40, 40
    %v51 = vsel %vm46, %v41, 40
    %v52 = vsel %vm47, %v42, 40
    %v53 = vsel %vm48, %v43, 40
    %vm54 = vcmp.lt.s32.totalorder %v49, %v53
    %v55 = vsel %vm54, %v49, %v53
    %vm56 = vcmp.lt.s32.totalorder %v55, %v50
    %v57 = vsel %vm56, %v55, %v50
    %vm58 = vcmp.lt.s32.totalorder %v51, %v52
    %v59 = vsel %vm58, %v51, %v52
    %vm60 = vcmp.lt.s32.totalorder %v57, %v59
    %v61 = vsel %vm60, %v57, %v59
    %v62 = vrot.slane %v61, 4
    %vm63 = vcmp.lt.s32.totalorder %v61, %v62
    %v64 = vsel %vm63, %v61, %v62
    %v65 = vrot.slane %v64, 2
    %vm66 = vcmp.lt.s32.totalorder %v64, %v65
    %v67 = vsel %vm66, %v64, %v65
    %v68 = vrot.slane %v67, 1
    %vm69 = vcmp.lt.s32.totalorder %v67, %v68
    %v70 = vsel %vm69, %v67, %v68
    %71 = vst [vmem:[#allocation5] sm:$0x1] %v70
    // Predicated region
    $region10: #{tpu_custom_call.1} parent=1 // pred_check
      _
    $region11: #{tpu_custom_call.1} parent=1 // pred_check_branch
      %73 = sbr.rel (0) target = $region13
    $region12: #{tpu_custom_call.1} parent=1 // pred_region
      %s75 = ssub.s32 16, 16
      %76 = vsyncadd [#allocation4], %s75
      %s78 = sshll.u32 [#allocation5], 4
      %s79 = int_to_ptr.vmem [resolvable:$true] %s78
      %81 = dma.vmem_to_hbm [thread:$0]  %s79, 16, %s1, [#allocation4]
    $region13: #{tpu_custom_call.1} parent=1 // pred_fallthru
      _
    // Predicated region
    $region14: #{tpu_custom_call.1} parent=1 // pred_check
      _
    $region15: #{tpu_custom_call.1} parent=1 // pred_check_branch
      %83 = sbr.rel (0) target = $region17
    $region16: #{tpu_custom_call.1} parent=1 // pred_region
      %84 = dma.done [#allocation4], 16
    $region17: #{tpu_custom_call.1} parent=1 // pred_fallthru
      _
    %85 = vsyncpa [#allocation3], 1
    %86 = vsyncpa [#allocation4], 1

</llo_original>
